<compile_context>
chip_gen: v7x
topology: tpu7x:2x2x1
jax: 0.10.0
libtpu: 0.0.40
codegen_flags: <defaults>
</compile_context>

<pallas_src>
import functools

import jax
import jax.numpy as jnp
from jax.experimental import pallas as pl
from jax.experimental.pallas import tpu as pltpu

_LANE = 128
_ROW_ALIGN = 16                  # bf16 packs 2 rows/sublane -> align rows to 16
_MAX_BATCH_TILE = 2048           # amortizes per-grid-step overhead to ~10%
_MIN_SPLIT_ROWS = 512            # >= this many rows -> force >=2 grid steps (v7x)
_TILE_VMEM_BUDGET = 28 << 20     # tile-sizing target, safe within v7x's 64 MiB
_VMEM_LIMIT_FLOOR = 16 << 20
_VMEM_LIMIT_CAP = 48 << 20
_MATMUL_DTYPE = jnp.bfloat16     # MXU inputs; accumulation stays f32


def _round_up(x, m):
    return (x + m - 1) // m * m


def _cdiv(a, b):
    return -(-a // b)


# --------------------------------------------------------------------------
# VMEM sizing / batch layout helpers (all static Python math at trace time).
# --------------------------------------------------------------------------
def _vmem_per_row_bytes(dins, dp_pad, out_itemsize):
    per_row = 0
    for d in dins:
        per_row += 2 * d * 4                 # double-buffered f32 input tile
        per_row += d * 2                     # in-kernel bf16 copy of the tile
        per_row += 2 * dp_pad * out_itemsize  # double-buffered output tile
        per_row += dp_pad * 4                # f32 matmul / normalize temp
    return per_row


def _vmem_fixed_bytes(dins, dp_pad):
    # Weights are grid-invariant but double-buffered by default.
    # TODO(synk): pipeline_mode=pl.Buffered(1) on the weight specs would keep a
    # single copy; left off here as it only matters at production-sized dims.
    return sum(2 * d * dp_pad * 2 for d in dins)


def _batch_layout(batch, per_row_bytes, fixed_bytes):
    """Pick (tile_rows, grid_steps, padded_batch) with minimal row padding."""
    b16 = _round_up(max(batch, 1), _ROW_ALIGN)
    avail = max(_TILE_VMEM_BUDGET - fixed_bytes, 1 << 20)
    tb_cap = max(_ROW_ALIGN,
                 (avail // max(per_row_bytes, 1)) // _ROW_ALIGN * _ROW_ALIGN)
    tb_cap = min(tb_cap, _MAX_BATCH_TILE)
    steps = _cdiv(b16, tb_cap)
    if b16 >= _MIN_SPLIT_ROWS:
        steps = max(steps, 2)   # let "parallel" shard over both v7x TensorCores
    tb = _round_up(_cdiv(b16, steps), _ROW_ALIGN)
    return tb, steps, tb * steps


def _vmem_limit(per_row_bytes, fixed_bytes, tb):
    need = fixed_bytes + per_row_bytes * tb
    return int(min(max(2 * need, _VMEM_LIMIT_FLOOR), _VMEM_LIMIT_CAP))


# --------------------------------------------------------------------------
# Kernels.
# --------------------------------------------------------------------------
def _l2_normalize_rows(y):
    # rsqrt + mul: transcendental runs on the EUP slot, no VPU divide in the
    # epilogue. The clamp keeps all-zero (padded) rows at 0 instead of NaN.
    ss = jnp.sum(y * y, axis=-1, keepdims=True)
    return y * jax.lax.rsqrt(jnp.maximum(ss, 1e-30))


def _proj_kernel(x_ref, w_ref, o_ref, *, norm):
    # Inputs arrive as f32 (single 4 B/elem HBM read); cast to bf16 in-kernel
    # right before the MXU dot (VPU cast is free under HBM slack).
    x = x_ref[...].astype(_MATMUL_DTYPE)
    y = jnp.dot(x, w_ref[...], preferred_element_type=jnp.float32)
    if norm:
        y = _l2_normalize_rows(y)
    o_ref[...] = y.astype(o_ref.dtype)


def _bi_proj_kernel(xi_ref, xt_ref, wi_ref, wt_ref, oi_ref, ot_ref):
    xi = xi_ref[...].astype(_MATMUL_DTYPE)
    yi = jnp.dot(xi, wi_ref[...], preferred_element_type=jnp.float32)
    oi_ref[...] = _l2_normalize_rows(yi).astype(oi_ref.dtype)
    xt = xt_ref[...].astype(_MATMUL_DTYPE)
    yt = jnp.dot(xt, wt_ref[...], preferred_element_type=jnp.float32)
    ot_ref[...] = _l2_normalize_rows(yt).astype(ot_ref.dtype)


def _kernel_weight(w, dp_pad):
    """[Dproj, Din] (PyTorch layout) -> lane-dense [Din, Dp_pad] bf16, pad=0."""
    wt = w.T.astype(_MATMUL_DTYPE)
    dproj = w.shape[0]
    if dp_pad != dproj:
        wt = jnp.pad(wt, ((0, 0), (0, dp_pad - dproj)))
    return wt


# --------------------------------------------------------------------------
# Jitted wrappers (one dispatch per forward; pad/slice glue fuses in).
# --------------------------------------------------------------------------
@functools.partial(jax.jit, static_argnames=("dim_projection", "out_dtype", "norm"))
def _project_single(x, w_padded, *, dim_projection, out_dtype, norm):
    batch, din = x.shape
    dp_pad = w_padded.shape[1]
    out_isz = jnp.dtype(out_dtype).itemsize
    per_row = _vmem_per_row_bytes((din,), dp_pad, out_isz)
    fixed = _vmem_fixed_bytes((din,), dp_pad)
    tb, steps, b_pad = _batch_layout(batch, per_row, fixed)

    xp = x if b_pad == batch else jnp.pad(x, ((0, b_pad - batch), (0, 0)))

    out = pl.pallas_call(
        functools.partial(_proj_kernel, norm=norm),
        out_shape=jax.ShapeDtypeStruct((b_pad, dp_pad), out_dtype),
        grid_spec=pltpu.PrefetchScalarGridSpec(
            num_scalar_prefetch=0,
            grid=(steps,),
            in_specs=[
                pl.BlockSpec((tb, din), lambda b: (b, 0)),
                pl.BlockSpec((din, dp_pad), lambda b: (0, 0)),   # VMEM-resident
            ],
            out_specs=pl.BlockSpec((tb, dp_pad), lambda b: (b, 0)),
        ),
        compiler_params=pltpu.CompilerParams(
            dimension_semantics=("parallel",),
            vmem_limit_bytes=_vmem_limit(per_row, fixed, tb)),
    )(xp, w_padded)

    if b_pad == batch and dp_pad == dim_projection:
        return out
    # TODO(synk): consumers tolerating zero-padded columns (e.g. img@txt.T
    # similarity) can take the padded output directly and skip this HBM pass.
    return out[:batch, :dim_projection]


@functools.partial(jax.jit, static_argnames=("dim_projection", "out_dtype"))
def _project_fused(x_img, x_txt, w_img, w_txt, *, dim_projection, out_dtype):
    batch, din_img = x_img.shape
    din_txt = x_txt.shape[1]
    dp_pad = w_img.shape[1]
    out_isz = jnp.dtype(out_dtype).itemsize
    per_row = _vmem_per_row_bytes((din_img, din_txt), dp_pad, out_isz)
    fixed = _vmem_fixed_bytes((din_img, din_txt), dp_pad)
    tb, steps, b_pad = _batch_layout(batch, per_row, fixed)

    xi, xt = x_img, x_txt
    if b_pad != batch:
        pad = ((0, b_pad - batch), (0, 0))
        xi = jnp.pad(xi, pad)
        xt = jnp.pad(xt, pad)

    oi, ot = pl.pallas_call(
        _bi_proj_kernel,
        out_shape=(jax.ShapeDtypeStruct((b_pad, dp_pad), out_dtype),
                   jax.ShapeDtypeStruct((b_pad, dp_pad), out_dtype)),
        grid_spec=pltpu.PrefetchScalarGridSpec(
            num_scalar_prefetch=0,
            grid=(steps,),
            in_specs=[
                pl.BlockSpec((tb, din_img), lambda b: (b, 0)),
                pl.BlockSpec((tb, din_txt), lambda b: (b, 0)),
                pl.BlockSpec((din_img, dp_pad), lambda b: (0, 0)),   # resident
                pl.BlockSpec((din_txt, dp_pad), lambda b: (0, 0)),   # resident
            ],
            out_specs=(
                pl.BlockSpec((tb, dp_pad), lambda b: (b, 0)),
                pl.BlockSpec((tb, dp_pad), lambda b: (b, 0)),
            ),
        ),
        compiler_params=pltpu.CompilerParams(
            dimension_semantics=("parallel",),
            vmem_limit_bytes=_vmem_limit(per_row, fixed, tb)),
    )(xi, xt, w_img, w_txt)

    if b_pad == batch and dp_pad == dim_projection:
        return oi, ot
    return oi[:batch, :dim_projection], ot[:batch, :dim_projection]


# --------------------------------------------------------------------------
# Module wrapper.
# --------------------------------------------------------------------------
class BiProjModelPallas:
    """JAX/Pallas equivalent of BiProjModel (is_image=True, is_text=True)."""

    def __init__(self, key, image_embed_dim, lang_width, dim_projection,
                 is_image=True, is_text=True, features_dtype=jnp.float32):
        assert is_image or is_text
        self.is_image = is_image
        self.is_text = is_text
        self.dim_projection = dim_projection
        # features_dtype=bf16 halves output HBM traffic; f32 default matches
        # the PyTorch module exactly.
        self._out_dtype = jnp.dtype(features_dtype)
        dp_pad = _round_up(dim_projection, _LANE)
        k_img, k_txt = jax.random.split(key)
        # TODO(synk): PyTorch uses trunc_normal_(std=0.02); plain normal*0.02
        # is a deterministic synthetic stand-in (no checkpoint load here).
        if is_image:
            w = 0.02 * jax.random.normal(
                k_img, (dim_projection, image_embed_dim), dtype=jnp.float32)
            self.image_projection = w                # PyTorch layout [Dproj, Din]
            self._w_img = _kernel_weight(w, dp_pad)  # built once at init
        if is_text:
            w = 0.02 * jax.random.normal(
                k_txt, (dim_projection, lang_width), dtype=jnp.float32)
            self.lang_projection = w
            self._w_txt = _kernel_weight(w, dp_pad)

    def encode_image(self, image, norm=True):
        if not self.is_image:
            raise ValueError(
                '[encode_image]: The model does not contain image projector')
        return _project_single(image, self._w_img,
                               dim_projection=self.dim_projection,
                               out_dtype=self._out_dtype, norm=bool(norm))

    def encode_text(self, text, norm=True):
        if not self.is_text:
            raise ValueError(
                '[encode_text]: The model does not contain text projector')
        return _project_single(text, self._w_txt,
                               dim_projection=self.dim_projection,
                               out_dtype=self._out_dtype, norm=bool(norm))

    def __call__(self, image=None, text=None):
        if text is None:
            return self.encode_image(image)
        if image is None:
            return self.encode_text(text)
        if self.is_image and self.is_text and image.shape[0] == text.shape[0]:
            return _project_fused(image, text, self._w_img, self._w_txt,
                                  dim_projection=self.dim_projection,
                                  out_dtype=self._out_dtype)
        return self.encode_image(image), self.encode_text(text)


if __name__ == "__main__":
    key = jax.random.PRNGKey(0)
    k_model, k_img, k_txt = jax.random.split(key, 3)

    batch = 8
    image_embed_dim = 32      # config.IMAGE_ENCODER.SPEC.EMBED_DIM
    lang_width = 48           # config.LANG_ENCODER.WIDTH
    dim_projection = 64       # config.UNICL_MODEL.DIM_PROJECTION

    model = BiProjModelPallas(k_model, image_embed_dim, lang_width,
                              dim_projection)

    image = jax.random.normal(k_img, (batch, image_embed_dim), jnp.float32)
    text = jax.random.normal(k_txt, (batch, lang_width), jnp.float32)

    # Fused two-modality forward (single pallas_call).
    feat_img, feat_txt = model(image=image, text=text)
    jax.block_until_ready((feat_img, feat_txt))

    # Single-modality paths (+ no-norm path).
    only_img = model(image=image)
    only_txt = model(text=text)
    proj_img_nonorm = model.encode_image(image, norm=False)
    jax.block_until_ready((only_img, only_txt, proj_img_nonorm))

    # References.
    def ref_proj_bf16(x, w):   # same math as the kernel (bf16 MXU, f32 accum)
        return jnp.dot(x.astype(jnp.bfloat16), w.T.astype(jnp.bfloat16),
                       preferred_element_type=jnp.float32)

    def ref_norm_bf16(x, w):
        y = ref_proj_bf16(x, w)
        return y / jnp.linalg.norm(y, axis=-1, keepdims=True)

    def ref_norm_f32(x, w):    # full-precision PyTorch math (loose bound)
        y = x @ w.T
        return y / jnp.linalg.norm(y, axis=-1, keepdims=True)

    ref_img = ref_norm_bf16(image, model.image_projection)
    ref_txt = ref_norm_bf16(text, model.lang_projection)

    assert feat_img.shape == (batch, dim_projection)
    assert feat_txt.shape == (batch, dim_projection)
    assert feat_img.dtype == jnp.float32 and feat_txt.dtype == jnp.float32
    assert jnp.allclose(feat_img, ref_img, atol=1e-4, rtol=1e-4)
    assert jnp.allclose(feat_txt, ref_txt, atol=1e-4, rtol=1e-4)
    assert jnp.allclose(feat_img, ref_norm_f32(image, model.image_projection),
                        atol=2e-2, rtol=2e-2)
    assert jnp.allclose(feat_txt, ref_norm_f32(text, model.lang_projection),
                        atol=2e-2, rtol=2e-2)
    assert jnp.allclose(only_img, feat_img, atol=1e-5, rtol=1e-5)
    assert jnp.allclose(only_txt, feat_txt, atol=1e-5, rtol=1e-5)
    assert jnp.allclose(proj_img_nonorm,
                        ref_proj_bf16(image, model.image_projection),
                        atol=1e-4, rtol=1e-4)
    assert jnp.all(jnp.isfinite(feat_img)) and jnp.all(jnp.isfinite(feat_txt))

    print("KERNEL_OK")
</pallas_src>

<mosaic_0001>
module attributes {stable_mosaic.version = 11 : i64} {
  func.func @_bi_proj_kernel(%arg0: i32, %arg1: memref<16x32xf32, #tpu.memory_space<vmem>>, %arg2: memref<16x48xf32, #tpu.memory_space<vmem>>, %arg3: memref<32x128xbf16, #tpu.memory_space<vmem>>, %arg4: memref<48x128xbf16, #tpu.memory_space<vmem>>, %arg5: memref<16x128xf32, #tpu.memory_space<vmem>>, %arg6: memref<16x128xf32, #tpu.memory_space<vmem>>) attributes {dimension_semantics = [#tpu.dimension_semantics<parallel>], iteration_bounds = array<i64: 1>, scalar_prefetch = 0 : i64, scratch_operands = 0 : i64, tpu.core_type = #tpu.core_type<tc>, window_params = [{transform_indices = @transform_0, window_bounds = array<i64: 16, 32>}, {transform_indices = @transform_1, window_bounds = array<i64: 16, 48>}, {pipeline_mode = #tpu.pipeline_mode<synchronous>, transform_indices = @transform_2, window_bounds = array<i64: 32, 128>}, {pipeline_mode = #tpu.pipeline_mode<synchronous>, transform_indices = @transform_3, window_bounds = array<i64: 48, 128>}, {transform_indices = @transform_4, window_bounds = array<i64: 16, 128>}, {transform_indices = @transform_5, window_bounds = array<i64: 16, 128>}]} {
    %c0 = arith.constant 0 : index
    %c0_0 = arith.constant 0 : index
    %0 = vector.load %arg1[%c0, %c0_0] : memref<16x32xf32, #tpu.memory_space<vmem>>, vector<16x32xf32>
    %1 = arith.truncf %0 : vector<16x32xf32> to vector<16x32xbf16>
    %c0_1 = arith.constant 0 : index
    %c0_2 = arith.constant 0 : index
    %2 = vector.load %arg3[%c0_1, %c0_2] : memref<32x128xbf16, #tpu.memory_space<vmem>>, vector<32x128xbf16>
    %cst = arith.constant dense<0.000000e+00> : vector<16x128xf32>
    %3 = tpu.matmul %1, %2, %cst {dimension_numbers = #tpu.dot_dimension_numbers<[1], [0], [0], [1], [0, 0, 1, 1], [], []>} : vector<16x32xbf16>, vector<32x128xbf16>, vector<16x128xf32> -> vector<16x128xf32>
    %4 = arith.mulf %3, %3 : vector<16x128xf32>
    %cst_3 = arith.constant dense<0.000000e+00> : vector<16xf32>
    %5 = vector.multi_reduction <add>, %4, %cst_3 [1] : vector<16x128xf32> to vector<16xf32>
    %6 = vector.shape_cast %5 : vector<16xf32> to vector<16x1xf32>
    %cst_4 = arith.constant 1.000000e-30 : f32
    %7 = vector.broadcast %cst_4 : f32 to vector<16x1xf32>
    %8 = arith.maximumf %6, %7 : vector<16x1xf32>
    %9 = math.rsqrt %8 : vector<16x1xf32>
    %10 = vector.broadcast %9 : vector<16x1xf32> to vector<16x128xf32>
    %11 = arith.mulf %3, %10 : vector<16x128xf32>
    %c0_5 = arith.constant 0 : index
    %c0_6 = arith.constant 0 : index
    %12 = vector.load %arg5[%c0_5, %c0_6] : memref<16x128xf32, #tpu.memory_space<vmem>>, vector<16x128xf32>
    tpu.vector_store %arg5[%c0_5, %c0_6], %11 {strides = array<i32>} : memref<16x128xf32, #tpu.memory_space<vmem>>, vector<16x128xf32>,
    %c0_7 = arith.constant 0 : index
    %c0_8 = arith.constant 0 : index
    %13 = vector.load %arg2[%c0_7, %c0_8] : memref<16x48xf32, #tpu.memory_space<vmem>>, vector<16x48xf32>
    %14 = arith.truncf %13 : vector<16x48xf32> to vector<16x48xbf16>
    %c0_9 = arith.constant 0 : index
    %c0_10 = arith.constant 0 : index
    %15 = vector.load %arg4[%c0_9, %c0_10] : memref<48x128xbf16, #tpu.memory_space<vmem>>, vector<48x128xbf16>
    %cst_11 = arith.constant dense<0.000000e+00> : vector<16x128xf32>
    %16 = tpu.matmul %14, %15, %cst_11 {dimension_numbers = #tpu.dot_dimension_numbers<[1], [0], [0], [1], [0, 0, 1, 1], [], []>} : vector<16x48xbf16>, vector<48x128xbf16>, vector<16x128xf32> -> vector<16x128xf32>
    %17 = arith.mulf %16, %16 : vector<16x128xf32>
    %cst_12 = arith.constant dense<0.000000e+00> : vector<16xf32>
    %18 = vector.multi_reduction <add>, %17, %cst_12 [1] : vector<16x128xf32> to vector<16xf32>
    %19 = vector.shape_cast %18 : vector<16xf32> to vector<16x1xf32>
    %cst_13 = arith.constant 1.000000e-30 : f32
    %20 = vector.broadcast %cst_13 : f32 to vector<16x1xf32>
    %21 = arith.maximumf %19, %20 : vector<16x1xf32>
    %22 = math.rsqrt %21 : vector<16x1xf32>
    %23 = vector.broadcast %22 : vector<16x1xf32> to vector<16x128xf32>
    %24 = arith.mulf %16, %23 : vector<16x128xf32>
    %c0_14 = arith.constant 0 : index
    %c0_15 = arith.constant 0 : index
    %25 = vector.load %arg6[%c0_14, %c0_15] : memref<16x128xf32, #tpu.memory_space<vmem>>, vector<16x128xf32>
    tpu.vector_store %arg6[%c0_14, %c0_15], %24 {strides = array<i32>} : memref<16x128xf32, #tpu.memory_space<vmem>>, vector<16x128xf32>,
    return
  }
  func.func @transform_0(%arg0: i32) -> (i32, i32) {
    %c0_i32 = arith.constant 0 : i32
    %c0_i32_0 = arith.constant 0 : i32
    return %arg0, %c0_i32 : i32, i32
  }
  func.func @transform_1(%arg0: i32) -> (i32, i32) {
    %c0_i32 = arith.constant 0 : i32
    %c0_i32_0 = arith.constant 0 : i32
    return %arg0, %c0_i32 : i32, i32
  }
  func.func @transform_2(%arg0: i32) -> (i32, i32) {
    %c0_i32 = arith.constant 0 : i32
    %c0_i32_0 = arith.constant 0 : i32
    %c0_i32_1 = arith.constant 0 : i32
    return %c0_i32, %c0_i32_0 : i32, i32
  }
  func.func @transform_3(%arg0: i32) -> (i32, i32) {
    %c0_i32 = arith.constant 0 : i32
    %c0_i32_0 = arith.constant 0 : i32
    %c0_i32_1 = arith.constant 0 : i32
    return %c0_i32, %c0_i32_0 : i32, i32
  }
  func.func @transform_4(%arg0: i32) -> (i32, i32) {
    %c0_i32 = arith.constant 0 : i32
    %c0_i32_0 = arith.constant 0 : i32
    return %arg0, %c0_i32 : i32, i32
  }
  func.func @transform_5(%arg0: i32) -> (i32, i32) {
    %c0_i32 = arith.constant 0 : i32
    %c0_i32_0 = arith.constant 0 : i32
    return %arg0, %c0_i32 : i32, i32
  }
}

</mosaic_0001>

<llo_original>
// kernel: _project_fused.1
$region0: #{_project_fused.1}
  #allocation0 [shape = 'u32[]', space=smem, size = 0x4, offset = 0x4, fixed_abs, tag = 'smem constant byte address 0x4 - core index']
  #allocation1 [shape = 'u32[144,128]{1,0:T(1,128)}', space=vmem, size = 0x12000, scoped, tag = 'internal scratch']
  %s0 = inlined_call_operand.vmem [shape: f32[16,32], index: 0, kind: input, shape index: {}]
  %s1 = inlined_call_operand.vmem [shape: f32[16,48], index: 1, kind: input, shape index: {}]
  %s2 = inlined_call_operand.vmem [shape: bf16[32,128], index: 2, kind: input, shape index: {}]
  %s3 = inlined_call_operand.vmem [shape: bf16[48,128], index: 3, kind: input, shape index: {}]
  %s4 = inlined_call_operand.vmem [shape: f32[16,128], index: 4, kind: output, shape index: {0}]
  %s5 = inlined_call_operand.vmem [shape: f32[16,128], index: 5, kind: output, shape index: {1}]
  %6 = xla_tuple %s4, %s5
  %s7 = sld [smem:[#allocation0]]
  $region34: #{_project_fused.1} parent=0
    _
  %s9 = ssub.s32 1, %s7
  %s10 = scalar_select 0, %s9, %s7
  // Predicated region
  $region2: #{_project_fused.1} parent=0 // pred_check
    _
  $region3: #{_project_fused.1} parent=0 // pred_check_branch
    %12 = sbr.rel (0) target = $region5
  $region4: #{_project_fused.1} parent=0 // pred_region
    _
  $region5: #{_project_fused.1} parent=0 // pred_fallthru
    _
  // Predicated region
  $region6: #{_project_fused.1} parent=0 // pred_check
    _
  $region7: #{_project_fused.1} parent=0 // pred_check_branch
    %14 = sbr.rel (0) target = $region9
  $region8: #{_project_fused.1} parent=0 // pred_region
    _
  $region9: #{_project_fused.1} parent=0 // pred_fallthru
    _
  // Predicated region
  $region10: #{_project_fused.1} parent=0 // pred_check
    _
  $region11: #{_project_fused.1} parent=0 // pred_check_branch
    %16 = sbr.rel (0) target = $region13
  $region12: #{_project_fused.1} parent=0 // pred_region
    _
  $region13: #{_project_fused.1} parent=0 // pred_fallthru
    _
  // Predicated region
  $region14: #{_project_fused.1} parent=0 // pred_check
    _
  $region15: #{_project_fused.1} parent=0 // pred_check_branch
    %18 = sbr.rel (0) target = $region17
  $region16: #{_project_fused.1} parent=0 // pred_region
    _
  $region17: #{_project_fused.1} parent=0 // pred_fallthru
    _
  %v20 = vld [vmem:[%s0] sm:$0xff]
  %v21 = vld [vmem:[%s0 + $0x8] sm:$0xff]
  %v22 = vpack.c.bf16 %v21, %v20
  %v23 = vld [vmem:[%s2] sm:$0xf]
  %v24 = vld [vmem:[%s2 + $0x4] sm:$0xf]
  %v25 = vld [vmem:[%s2 + $0x8] sm:$0xf]
  %v26 = vld [vmem:[%s2 + $0xc] sm:$0xf]
  %v31 = vunpack.c.l.b16 %v23
  %v32 = vunpack.c.l.b16 %v24
  %v33 = vunpack.c.l.b16 %v25
  %v34 = vunpack.c.l.b16 %v26
  %v35 = vpack.c.b16 %v32, %v31
  %v36 = vpack.c.b16 %v34, %v33
  %vm39 = vcmask 261120
  %v41 = vsel %vm39, %v22, 0
  %43 = vmatprep.subr.bf16.mxu0 0
  %44 = vmatpush1.bf16.msra.mxu0 %v35
  %45 = vmatprep.subr.bf16.mxu0 0
  %46 = vmatpush1.bf16.msra.mxu0 %v36
  %47 = vmatprep.subr.bf16.mxu0 0
  %48 = vmatpush1.bf16.msra.mxu0 0
  %49 = vmatprep.subr.bf16.mxu0 0
  %50 = vmatpush1.bf16.msra.mxu0 0
  %51 = vmatprep.subr.bf16.mxu0 0
  %52 = vmatpush1.bf16.msra.mxu0 0
  %53 = vmatprep.subr.bf16.mxu0 0
  %54 = vmatpush1.bf16.msra.mxu0 0
  %55 = vmatprep.subr.bf16.mxu0 0
  %56 = vmatpush1.bf16.msra.mxu0 0
  %57 = vmatprep.subr.bf16.mxu0 0
  %58 = vmatpush1.bf16.msra.mxu0 0
  %59 = vmatprep.subr.bf16.mxu0 0
  %60 = vmatpush1.bf16.msra.mxu0 0
  %61 = vmatprep.subr.bf16.mxu0 0
  %62 = vmatpush1.bf16.msra.mxu0 0
  %63 = vmatprep.subr.bf16.mxu0 0
  %64 = vmatpush1.bf16.msra.mxu0 0
  %65 = vmatprep.subr.bf16.mxu0 0
  %66 = vmatpush1.bf16.msra.mxu0 0
  %67 = vmatprep.subr.bf16.mxu0 0
  %68 = vmatpush1.bf16.msra.mxu0 0
  %69 = vmatprep.subr.bf16.mxu0 0
  %70 = vmatpush1.bf16.msra.mxu0 0
  %71 = vmatprep.subr.bf16.mxu0 0
  %72 = vmatpush1.bf16.msra.mxu0 0
  %73 = vmatprep.subr.bf16.mxu0 0
  %74 = vmatpush1.bf16.msra.mxu0 0
  %75 = vmatprep.mubr.bf16.mxu0 0
  %76 = vmatmul.mubr.bf16.gmra.mrb[0].mxu0 %v41
  %v77 = vpop.f32.mrb[0].mxu0
  %v78 = vadd.f32 0.0, %v77
  %v79 = vpop.f32.mrb[0].mxu0
  %v80 = vpop.f32.mrb[0].mxu0
  %v81 = vadd.f32 0.0, %v80
  %v82 = vpop.f32.mrb[0].mxu0
  %83 = vdwg.mxu0
  %v84 = vmul.f32 %v78, %v78
  %v85 = vmul.f32 %v81, %v81
  %86 = vadd.xlane.f32.xlu0 %v84
  %v87 = vpop.xlane.xlu0 %86
  %88 = vadd.xlane.f32.xlu0 %v85
  %v89 = vpop.xlane.xlu0 %88
  %v90 = vmax.f32 %v87, 1e-30
  %v91 = vmax.f32 %v89, 1e-30
  %v92 = vrsqrt.pop %v90
  %v93 = vrsqrt.pop %v91
  %v94 = vmul.f32 %v78, %v92
  %v95 = vmul.f32 %v81, %v93
  %96 = vst [vmem:[%s4] sm:$0xff] %v94
  %97 = vst [vmem:[%s4 + $0x8] sm:$0xff] %v95
  %v98 = vld [vmem:[%s1] sm:$0xff]
  %v99 = vld [vmem:[%s1 + $0x8] sm:$0xff]
  %v100 = vpack.c.bf16 %v99, %v98
  %v101 = vld [vmem:[%s3] sm:$0xf]
  %v102 = vld [vmem:[%s3 + $0x4] sm:$0xf]
  %v103 = vld [vmem:[%s3 + $0x8] sm:$0xf]
  %v104 = vld [vmem:[%s3 + $0xc] sm:$0xf]
  %v105 = vld [vmem:[%s3 + $0x10] sm:$0xf]
  %v106 = vld [vmem:[%s3 + $0x14] sm:$0xf]
  %v113 = vunpack.c.l.b16 %v101
  %v114 = vunpack.c.l.b16 %v102
  %v115 = vunpack.c.l.b16 %v103
  %v116 = vunpack.c.l.b16 %v104
  %v117 = vunpack.c.l.b16 %v105
  %v118 = vunpack.c.l.b16 %v106
  %v119 = vpack.c.b16 %v114, %v113
  %v120 = vpack.c.b16 %v116, %v115
  %v121 = vpack.c.b16 %v118, %v117
  %vm125 = vcmask 392192
  %v127 = vsel %vm125, %v100, 0
  %129 = vmatprep.subr.bf16.mxu0 0
  %130 = vmatpush1.bf16.msra.mxu0 %v119
  %131 = vmatprep.subr.bf16.mxu0 0
  %132 = vmatpush1.bf16.msra.mxu0 %v120
  %133 = vmatprep.subr.bf16.mxu0 0
  %134 = vmatpush1.bf16.msra.mxu0 %v121
  %135 = vmatprep.subr.bf16.mxu0 0
  %136 = vmatpush1.bf16.msra.mxu0 0
  %137 = vmatprep.subr.bf16.mxu0 0
  %138 = vmatpush1.bf16.msra.mxu0 0
  %139 = vmatprep.subr.bf16.mxu0 0
  %140 = vmatpush1.bf16.msra.mxu0 0
  %141 = vmatprep.subr.bf16.mxu0 0
  %142 = vmatpush1.bf16.msra.mxu0 0
  %143 = vmatprep.subr.bf16.mxu0 0
  %144 = vmatpush1.bf16.msra.mxu0 0
  %145 = vmatprep.subr.bf16.mxu0 0
  %146 = vmatpush1.bf16.msra.mxu0 0
  %147 = vmatprep.subr.bf16.mxu0 0
  %148 = vmatpush1.bf16.msra.mxu0 0
  %149 = vmatprep.subr.bf16.mxu0 0
  %150 = vmatpush1.bf16.msra.mxu0 0
  %151 = vmatprep.subr.bf16.mxu0 0
  %152 = vmatpush1.bf16.msra.mxu0 0
  %153 = vmatprep.subr.bf16.mxu0 0
  %154 = vmatpush1.bf16.msra.mxu0 0
  %155 = vmatprep.subr.bf16.mxu0 0
  %156 = vmatpush1.bf16.msra.mxu0 0
  %157 = vmatprep.subr.bf16.mxu0 0
  %158 = vmatpush1.bf16.msra.mxu0 0
  %159 = vmatprep.subr.bf16.mxu0 0
  %160 = vmatpush1.bf16.msra.mxu0 0
  %161 = vmatprep.mubr.bf16.mxu0 0
  %162 = vmatmul.mubr.bf16.gmra.mrb[0].mxu0 %v127
  %v163 = vpop.f32.mrb[0].mxu0
  %v164 = vadd.f32 0.0, %v163
  %v165 = vpop.f32.mrb[0].mxu0
  %v166 = vpop.f32.mrb[0].mxu0
  %v167 = vadd.f32 0.0, %v166
  %v168 = vpop.f32.mrb[0].mxu0
  %169 = vdwg.mxu0
  %v170 = vmul.f32 %v164, %v164
  %v171 = vmul.f32 %v167, %v167
  %172 = vadd.xlane.f32.xlu0 %v170
  %v173 = vpop.xlane.xlu0 %172
  %174 = vadd.xlane.f32.xlu0 %v171
  %v175 = vpop.xlane.xlu0 %174
  %v176 = vmax.f32 %v173, 1e-30
  %v177 = vmax.f32 %v175, 1e-30
  %v178 = vrsqrt.pop %v176
  %v179 = vrsqrt.pop %v177
  %v180 = vmul.f32 %v164, %v178
  %v181 = vmul.f32 %v167, %v179
  %182 = vst [vmem:[%s5] sm:$0xff] %v180
  %183 = vst [vmem:[%s5 + $0x8] sm:$0xff] %v181
  // Predicated region
  $region18: #{_project_fused.1} parent=0 // pred_check
    _
  $region19: #{_project_fused.1} parent=0 // pred_check_branch
    %185 = sbr.rel (0) target = $region21
  $region20: #{_project_fused.1} parent=0 // pred_region
    _
  $region21: #{_project_fused.1} parent=0 // pred_fallthru
    _
  // Predicated region
  $region22: #{_project_fused.1} parent=0 // pred_check
    _
  $region23: #{_project_fused.1} parent=0 // pred_check_branch
    %187 = sbr.rel (0) target = $region25
  $region24: #{_project_fused.1} parent=0 // pred_region
    _
  $region25: #{_project_fused.1} parent=0 // pred_fallthru
    _
  // Predicated region
  $region26: #{_project_fused.1} parent=0 // pred_check
    _
  $region27: #{_project_fused.1} parent=0 // pred_check_branch
    %189 = sbr.rel (0) target = $region29
  $region28: #{_project_fused.1} parent=0 // pred_region
    _
  $region29: #{_project_fused.1} parent=0 // pred_fallthru
    _
  // Predicated region
  $region30: #{_project_fused.1} parent=0 // pred_check
    _
  $region31: #{_project_fused.1} parent=0 // pred_check_branch
    %191 = sbr.rel (0) target = $region33
  $region32: #{_project_fused.1} parent=0 // pred_region
    _
  $region33: #{_project_fused.1} parent=0 // pred_fallthru
    _

</llo_original>
